<compile_context>
chip_gen: v6e
topology: v6e:2x2x1
jax: 0.10.0
libtpu: 0.0.40
codegen_flags: <defaults>
</compile_context>

<pallas_src>
import functools

import jax
import jax.numpy as jnp
from jax import lax
from jax.experimental import pallas as pl
from jax.experimental.pallas import tpu as pltpu

_LANES = 128
_BLOCK_ROWS = 8192  # rows of the (rows, 128) slab per grid step; 4 MiB f32 tile


def _focal_bce_kernel(x_ref, t_ref, o_ref, *, rows, needs_row_mask):
    """Per-block per-lane partial sums of stable BCE-with-logits.

    Each grid step processes a (block_rows, 128) tile of the flattened
    logits/targets and writes a (1, 128) slab of per-lane partial sums.
    Masking of Pallas ragged-last-block garbage is only emitted when
    rows % block_rows != 0, and only executed in the final grid block.
    """
    x = x_ref[...].astype(jnp.float32)
    t = t_ref[...].astype(jnp.float32)

    # Stable BCE-with-logits == -(t*log(sigmoid(x)) + (1-t)*log(1-sigmoid(x)))
    loss = jnp.maximum(x, 0.0) - x * t + jnp.log1p(jnp.exp(-jnp.abs(x)))

    if needs_row_mask:
        blk = pl.program_id(0)
        is_last = blk == pl.num_programs(0) - 1

        @pl.when(is_last)
        def _():
            # Only the final grid block can contain out-of-range rows (the grid
            # tiles rows contiguously; lane tail is host-padded with benign
            # values). Garbage rows may hold inf/NaN -> discarded by the select.
            row = lax.broadcasted_iota(jnp.int32, loss.shape, 0) + blk * x_ref.shape[0]
            masked = jnp.where(row < rows, loss, 0.0)
            o_ref[...] = jnp.sum(masked, axis=0, keepdims=True)

        @pl.when(jnp.logical_not(is_last))
        def _():
            o_ref[...] = jnp.sum(loss, axis=0, keepdims=True)
    else:
        o_ref[...] = jnp.sum(loss, axis=0, keepdims=True)


def focal_loss(logits, targets, *, alpha=0.8, gamma=2.0, block_rows=_BLOCK_ROWS):
    """Focal loss matching the PyTorch module's forward semantics.

    `logits`/`targets` may be f32, bf16, bool or int — the kernel casts to f32
    after the (narrower) HBM load.
    """
    assert logits.shape == targets.shape
    n = logits.size

    # Flatten (free for contiguous arrays); keep the caller's dtype in HBM.
    x = logits.reshape(-1)
    t = targets.reshape(-1)

    rows = pl.cdiv(n, _LANES)
    padded = rows * _LANES
    if padded != n:
        # Ragged lane tail: pad with benign values (loss(x=30, t=1) ~ 9e-14) so
        # no in-kernel lane mask is needed.
        # TODO(synk): this pad is a full HBM copy; only taken when numel % 128 != 0.
        x = jnp.pad(x, (0, padded - n), constant_values=x.dtype.type(30.0))
        t = jnp.pad(t, (0, padded - n), constant_values=t.dtype.type(1))

    x2 = x.reshape(rows, _LANES)
    t2 = t.reshape(rows, _LANES)

    # block_rows is either a multiple of 8 or equals the full row dim -> legal tile.
    blk_rows = min(block_rows, rows)
    assert blk_rows == rows or blk_rows % 8 == 0, "block_rows must be a multiple of 8"
    num_blocks = pl.cdiv(rows, blk_rows)
    needs_row_mask = (rows % blk_rows) != 0

    in_spec = pl.BlockSpec((blk_rows, _LANES), lambda i: (i, 0))
    bytes_in = x2.size * x2.dtype.itemsize + t2.size * t2.dtype.itemsize

    partials = pl.pallas_call(
        functools.partial(_focal_bce_kernel, rows=rows, needs_row_mask=needs_row_mask),
        out_shape=jax.ShapeDtypeStruct((1, num_blocks * _LANES), jnp.float32),
        grid_spec=pltpu.PrefetchScalarGridSpec(
            num_scalar_prefetch=0,
            grid=(num_blocks,),
            in_specs=[in_spec, in_spec],
            out_specs=pl.BlockSpec((1, _LANES), lambda i: (0, i)),
        ),
        compiler_params=pltpu.CompilerParams(
            dimension_semantics=("parallel",),
            vmem_limit_bytes=32 << 20,
        ),
        cost_estimate=pl.CostEstimate(
            flops=10 * padded,
            transcendentals=2 * padded,
            bytes_accessed=bytes_in + num_blocks * _LANES * 4,
        ),
    )(x2, t2)

    # Tiny final combine + scalar focal modulation (matches the PyTorch module,
    # which applies the focal factor to the *mean* BCE, not per-element).
    bce = jnp.sum(partials) / n
    bce_exp = jnp.exp(-bce)
    return alpha * (1.0 - bce_exp) ** gamma * bce


def _ref_focal(logits, targets, alpha=0.8, gamma=2.0):
    """Pure-JAX reference replicating the PyTorch forward."""
    p = jax.nn.sigmoid(logits.astype(jnp.float32))
    t = targets.astype(jnp.float32)
    bce = jnp.mean(-(t * jnp.log(p) + (1.0 - t) * jnp.log(1.0 - p)))
    return alpha * (1.0 - jnp.exp(-bce)) ** gamma * bce


if __name__ == "__main__":
    key = jax.random.PRNGKey(0)
    k1, k2 = jax.random.split(key)

    # Small NCHW-like shapes consistent with typical usage of this loss.
    shape = (2, 4, 16, 16)
    logits = jax.random.normal(k1, shape, dtype=jnp.float32)
    targets = jax.random.bernoulli(k2, p=0.5, shape=shape).astype(jnp.float32)

    loss = focal_loss(logits, targets)
    jax.block_until_ready(loss)
    ref = _ref_focal(logits, targets)
    assert jnp.allclose(loss, ref, atol=1e-5, rtol=1e-5), (loss, ref)

    # Ragged-lane path (numel % 128 != 0 -> benign host pad, no in-kernel mask).
    k3, k4 = jax.random.split(k1)
    shape2 = (3, 5, 7)
    lg2 = jax.random.normal(k3, shape2, dtype=jnp.float32)
    tg2 = jax.random.bernoulli(k4, p=0.5, shape=shape2).astype(jnp.float32)
    loss2 = focal_loss(lg2, tg2)
    jax.block_until_ready(loss2)
    ref2 = _ref_focal(lg2, tg2)
    assert jnp.allclose(loss2, ref2, atol=1e-5, rtol=1e-5), (loss2, ref2)

    # Multi-block + ragged-last-block masked path, exercised with a small
    # block_rows override (production default is 8192 rows).
    k5, k6 = jax.random.split(k2)
    shape3 = (4, 8, 16, 16)  # 16384 elems -> 128 rows; 128 % 48 != 0 -> mask path
    lg3 = jax.random.normal(k5, shape3, dtype=jnp.float32)
    tg3 = jax.random.bernoulli(k6, p=0.5, shape=shape3).astype(jnp.float32)
    loss3 = focal_loss(lg3, tg3, block_rows=48)
    jax.block_until_ready(loss3)
    ref3 = _ref_focal(lg3, tg3)
    assert jnp.allclose(loss3, ref3, atol=1e-5, rtol=1e-5), (loss3, ref3)

    print("KERNEL_OK")
</pallas_src>

<mosaic_0001>
module attributes {stable_mosaic.version = 11 : i64} {
  func.func @_focal_bce_kernel(%arg0: i32, %arg1: memref<16x128xf32, #tpu.memory_space<vmem>>, %arg2: memref<16x128xf32, #tpu.memory_space<vmem>>, %arg3: memref<1x128xf32, #tpu.memory_space<vmem>>) attributes {dimension_semantics = [#tpu.dimension_semantics<parallel>], iteration_bounds = array<i64: 1>, scalar_prefetch = 0 : i64, scratch_operands = 0 : i64, tpu.core_type = #tpu.core_type<tc>, window_params = [{transform_indices = @transform_0, window_bounds = array<i64: 16, 128>}, {transform_indices = @transform_1, window_bounds = array<i64: 16, 128>}, {transform_indices = @transform_2, window_bounds = array<i64: 1, 128>}]} {
    %c0 = arith.constant 0 : index
    %c0_0 = arith.constant 0 : index
    %0 = vector.load %arg1[%c0, %c0_0] : memref<16x128xf32, #tpu.memory_space<vmem>>, vector<16x128xf32>
    %c0_1 = arith.constant 0 : index
    %c0_2 = arith.constant 0 : index
    %1 = vector.load %arg2[%c0_1, %c0_2] : memref<16x128xf32, #tpu.memory_space<vmem>>, vector<16x128xf32>
    %cst = arith.constant 0.000000e+00 : f32
    %2 = vector.broadcast %cst : f32 to vector<16x128xf32>
    %3 = arith.maximumf %0, %2 : vector<16x128xf32>
    %4 = arith.mulf %0, %1 : vector<16x128xf32>
    %5 = arith.subf %3, %4 : vector<16x128xf32>
    %6 = math.absf %0 : vector<16x128xf32>
    %cst_3 = arith.constant 0.000000e+00 : f32
    %7 = vector.broadcast %cst_3 : f32 to vector<16x128xf32>
    %8 = arith.subf %7, %6 : vector<16x128xf32>
    %9 = math.exp %8 : vector<16x128xf32>
    %10 = math.log1p %9 : vector<16x128xf32>
    %11 = arith.addf %5, %10 : vector<16x128xf32>
    %cst_4 = arith.constant dense<0.000000e+00> : vector<128xf32>
    %12 = vector.multi_reduction <add>, %11, %cst_4 [0] : vector<16x128xf32> to vector<128xf32>
    %13 = vector.shape_cast %12 : vector<128xf32> to vector<1x128xf32>
    %c0_5 = arith.constant 0 : index
    %c0_6 = arith.constant 0 : index
    %14 = vector.load %arg3[%c0_5, %c0_6] : memref<1x128xf32, #tpu.memory_space<vmem>>, vector<1x128xf32>
    tpu.vector_store %arg3[%c0_5, %c0_6], %13 {strides = array<i32>} : memref<1x128xf32, #tpu.memory_space<vmem>>, vector<1x128xf32>,
    return
  }
  func.func @transform_0(%arg0: i32) -> (i32, i32) {
    %c0_i32 = arith.constant 0 : i32
    %c0_i32_0 = arith.constant 0 : i32
    return %arg0, %c0_i32 : i32, i32
  }
  func.func @transform_1(%arg0: i32) -> (i32, i32) {
    %c0_i32 = arith.constant 0 : i32
    %c0_i32_0 = arith.constant 0 : i32
    return %arg0, %c0_i32 : i32, i32
  }
  func.func @transform_2(%arg0: i32) -> (i32, i32) {
    %c0_i32 = arith.constant 0 : i32
    %c0_i32_0 = arith.constant 0 : i32
    return %c0_i32, %arg0 : i32, i32
  }
}

</mosaic_0001>

<llo_original>
// kernel: tpu_custom_call.1
$region0: #{tpu_custom_call.1}
  #allocation0 [shape = 'u32[]', space=smem, size = 0x4, offset = 0x4, fixed_abs, tag = 'smem constant byte address 0x4 - core index']
  #allocation1 [shape = 'u32[144,128]{1,0:T(1,128)}', space=vmem, size = 0x12000, scoped, tag = 'internal scratch']
  %s0 = inlined_call_operand.hbm [shape: f32[16,128], index: 0, kind: input, shape index: {}]
  %s1 = inlined_call_operand.hbm [shape: f32[16,128], index: 1, kind: input, shape index: {}]
  %s2 = inlined_call_operand.hbm [shape: f32[1,128], index: 2, kind: output, shape index: {}]
  %s3 = sld [smem:[#allocation0]]
  $region26: #{tpu_custom_call.1} parent=0
    _
  %s5 = ssub.s32 1, %s3
  %s6 = scalar_select 0, %s5, %s3
  $region1: #{tpu_custom_call.1} parent=0
    #allocation2 [shape = 'u8[8192]{0}', space=vmem, size = 0x2000, scoped, tag = 'input window, operand 0, single buffered']
    #allocation3 [shape = 's32[1]{0}', space=sflag, size = 0x4, scoped, tag = 'scoped memory for tpu_custom_call.1']
    #allocation4 [shape = 's32[1]{0}', space=sflag, size = 0x4, scoped, tag = 'scoped memory for tpu_custom_call.1']
    #allocation5 [shape = 'u8[8192]{0}', space=vmem, size = 0x2000, scoped, tag = 'input window, operand 1, single buffered']
    #allocation6 [shape = 's32[1]{0}', space=sflag, size = 0x4, scoped, tag = 'scoped memory for tpu_custom_call.1']
    #allocation7 [shape = 'u8[512]{0}', space=vmem, size = 0x400, scoped, tag = 'output window, operand 0, single buffered']
    %7 = vsyncpa [#allocation3], 0
    %8 = vsyncpa [#allocation6], 0
    %9 = vsyncpa [#allocation4], 0
    // Predicated region
    $region2: #{tpu_custom_call.1} parent=1 // pred_check
      _
    $region3: #{tpu_custom_call.1} parent=1 // pred_check_branch
      %11 = sbr.rel (0) target = $region5
    $region4: #{tpu_custom_call.1} parent=1 // pred_region
      %s13 = ssub.s32 256, 256
      %14 = vsyncadd [#allocation3], %s13
      %s15 = sshll.u32 [#allocation2], 4
      %s16 = int_to_ptr.vmem [resolvable:$true] %s15
      %21 = dma.hbm_to_vmem [thread:$0]  %s0, 256, %s16, [#allocation3], 128, 128, 8
    $region5: #{tpu_custom_call.1} parent=1 // pred_fallthru
      _
    // Predicated region
    $region6: #{tpu_custom_call.1} parent=1 // pred_check
      _
    $region7: #{tpu_custom_call.1} parent=1 // pred_check_branch
      %23 = sbr.rel (0) target = $region9
    $region8: #{tpu_custom_call.1} parent=1 // pred_region
      %s25 = ssub.s32 256, 256
      %26 = vsyncadd [#allocation6], %s25
      %s27 = sshll.u32 [#allocation5], 4
      %s28 = int_to_ptr.vmem [resolvable:$true] %s27
      %33 = dma.hbm_to_vmem [thread:$0]  %s1, 256, %s28, [#allocation6], 128, 128, 8
    $region9: #{tpu_custom_call.1} parent=1 // pred_fallthru
      _
    // Predicated region
    $region10: #{tpu_custom_call.1} parent=1 // pred_check
      _
    $region11: #{tpu_custom_call.1} parent=1 // pred_check_branch
      %35 = sbr.rel (0) target = $region13
    $region12: #{tpu_custom_call.1} parent=1 // pred_region
      %36 = dma.done [#allocation3], 256
    $region13: #{tpu_custom_call.1} parent=1 // pred_fallthru
      _
    // Predicated region
    $region14: #{tpu_custom_call.1} parent=1 // pred_check
      _
    $region15: #{tpu_custom_call.1} parent=1 // pred_check_branch
      %38 = sbr.rel (0) target = $region17
    $region16: #{tpu_custom_call.1} parent=1 // pred_region
      %39 = dma.done [#allocation6], 256
    $region17: #{tpu_custom_call.1} parent=1 // pred_fallthru
      _
    %v40 = vld [vmem:[#allocation2] sm:$0xff]
    %v41 = vld [vmem:[#allocation2 + $0x8] sm:$0xff]
    %v42 = vld [vmem:[#allocation5] sm:$0xff]
    %v43 = vld [vmem:[#allocation5 + $0x8] sm:$0xff]
    %v44 = vmax.f32 %v40, 0.0
    %v45 = vmax.f32 %v41, 0.0
    %v46 = vmul.f32 %v40, %v42
    %v47 = vmul.f32 %v41, %v43
    %v48 = vsub.f32 %v44, %v46
    %v49 = vsub.f32 %v45, %v47
    %v50 = vand.u32 2147483647, %v40
    %v51 = vand.u32 2147483647, %v41
    %v52 = vsub.f32 0.0, %v50
    %v53 = vsub.f32 0.0, %v51
    %v54 = vmul.f32 %v52, 1.442695
    %v55 = vpow.pop %v54
    %v56 = vmul.f32 %v53, 1.442695
    %v57 = vpow.pop %v56
    %v58 = vadd.f32 %v55, 1.0
    %v59 = vlog2.pop %v58
    %v60 = vmul.f32 %v59, 0.6931472
    %v61 = vmul.f32 -0.5, %v55
    %v62 = vadd.f32 %v61, 1.0
    %v63 = vmul.f32 %v62, %v55
    %v64 = vand.u32 2147483647, %v55
    %vm65 = vcmp.lt.f32.partialorder %v64, 0.0004427343
    %v66 = vsel %vm65, %v63, %v60
    %v67 = vadd.f32 %v57, 1.0
    %v68 = vlog2.pop %v67
    %v69 = vmul.f32 %v68, 0.6931472
    %v70 = vmul.f32 -0.5, %v57
    %v71 = vadd.f32 %v70, 1.0
    %v72 = vmul.f32 %v71, %v57
    %v73 = vand.u32 2147483647, %v57
    %vm74 = vcmp.lt.f32.partialorder %v73, 0.0004427343
    %v75 = vsel %vm74, %v72, %v69
    %v76 = vadd.f32 %v48, %v66
    %v77 = vadd.f32 %v49, %v75
    %v78 = vadd.f32 %v76, %v77
    %v79 = vrot.slane %v78, 4
    %v80 = vadd.f32 %v78, %v79
    %v81 = vrot.slane %v80, 2
    %v82 = vadd.f32 %v80, %v81
    %v83 = vrot.slane %v82, 1
    %v84 = vadd.f32 %v82, %v83
    %85 = vst [vmem:[#allocation7] sm:$0x1] %v84
    // Predicated region
    $region18: #{tpu_custom_call.1} parent=1 // pred_check
      _
    $region19: #{tpu_custom_call.1} parent=1 // pred_check_branch
      %87 = sbr.rel (0) target = $region21
    $region20: #{tpu_custom_call.1} parent=1 // pred_region
      %s89 = ssub.s32 16, 16
      %90 = vsyncadd [#allocation4], %s89
      %s92 = sshll.u32 [#allocation7], 4
      %s93 = int_to_ptr.vmem [resolvable:$true] %s92
      %95 = dma.vmem_to_hbm [thread:$0]  %s93, 16, %s2, [#allocation4]
    $region21: #{tpu_custom_call.1} parent=1 // pred_fallthru
      _
    // Predicated region
    $region22: #{tpu_custom_call.1} parent=1 // pred_check
      _
    $region23: #{tpu_custom_call.1} parent=1 // pred_check_branch
      %97 = sbr.rel (0) target = $region25
    $region24: #{tpu_custom_call.1} parent=1 // pred_region
      %98 = dma.done [#allocation4], 16
    $region25: #{tpu_custom_call.1} parent=1 // pred_fallthru
      _
    %99 = vsyncpa [#allocation3], 1
    %100 = vsyncpa [#allocation6], 1
    %101 = vsyncpa [#allocation4], 1

</llo_original>
